<compile_context>
chip_gen: v5e
topology: v5e:2x2
jax: 0.10.0
libtpu: 0.0.40
codegen_flags: <defaults>
</compile_context>

<pallas_src>
import functools

import jax
import jax.numpy as jnp
from jax.experimental import pallas as pl
from jax.experimental.pallas import tpu as pltpu

TEMPERATURE = 0.05
INV_TEMPERATURE = 1.0 / TEMPERATURE
EPS = 1e-8
LABEL_SMOOTHING = 0.1
_NEG_LARGE = -1e30


def _round_up(x, m):
    return (x + m - 1) // m * m


def _vmem_capacity_bytes():
    """Per-core VMEM capacity; conservative (v7x) fallback if the query fails."""
    try:
        cap = int(pltpu.get_tpu_info().vmem_capacity_bytes)
        if cap > 0:
            return cap
    except Exception:
        pass
    return 64 * 1024 * 1024


# --------------------------------------------------------------------------
# Row-tiled kernel: x0 row tile pipelined, normalized x1 VMEM-resident.
# Emits per-tile partial sums -> grid axis is fully parallel.
# --------------------------------------------------------------------------
def _pair_loss_row_kernel(x0_ref, bn_ref, bsum_ref, out_ref, *,
                          n, n_cols, n_rows_pad, mxu_dtype):
    i = pl.program_id(0)
    tm = x0_ref.shape[0]

    x0_raw = x0_ref[...]
    x0f = x0_raw.astype(jnp.float32)

    a_sq = jnp.sum(x0f * x0f, axis=1, keepdims=True)                  # [tm, 1]
    row_scale = jax.lax.rsqrt(jnp.maximum(a_sq, EPS * EPS)) * INV_TEMPERATURE

    # MXU matmul, contracting last dims directly (no transpose pass); x0's
    # inverse norm and 1/T folded into one post-matmul multiply.
    sim = jax.lax.dot_general(
        x0_raw.astype(mxu_dtype), bn_ref[...],
        dimension_numbers=(((1,), (1,)), ((), ())),
        preferred_element_type=jnp.float32) * row_scale                # [tm, n_cols]

    # diag(sim) for this row tile: sublane-aligned read of the matching b_norm
    # rows, elementwise product, D-wide reduce (no [N,N] diag mask).
    g0 = pl.multiple_of(i * tm, tm)
    b_slice = bn_ref[pl.ds(g0, tm), :].astype(jnp.float32)             # [tm, d_pad]
    diag_sim = jnp.sum(x0f * b_slice, axis=1, keepdims=True) * row_scale

    # sum_j sim[i, j] over REAL columns via the precomputed column-sum of
    # b_norm (padded b_norm rows are zero): D-wide reduce instead of N-wide.
    bsum = bsum_ref[...].astype(jnp.float32)                           # [1, d_pad]
    row_sum = jnp.sum(x0f * bsum, axis=1, keepdims=True) * row_scale   # [tm, 1]

    # Stable LSE with NO column mask: padded sim columns are exactly zero, so
    # their contribution is a constant (n_cols - n) * exp(-m).
    m = jnp.max(sim, axis=1, keepdims=True)
    sum_exp = jnp.sum(jnp.exp(sim - m), axis=1, keepdims=True)
    if n_cols > n:  # static
        sum_exp = sum_exp - jnp.float32(n_cols - n) * jnp.exp(-m)
        # Cancellation floor: the real sum always contains the diagonal term.
        sum_exp = jnp.maximum(sum_exp, jnp.exp(diag_sim - m))
    norm = m + jnp.log(sum_exp)                                        # m + lse

    diag_logp = diag_sim - norm                                        # logp[i, i]
    row_total_logp = row_sum - jnp.float32(n) * norm                   # sum_j logp[i, j]

    if n_rows_pad > n:  # static: padded rows contribute nothing
        row_ids = g0 + jax.lax.broadcasted_iota(jnp.int32, (tm, 1), 0)
        valid = (row_ids < n).astype(jnp.float32)
        diag_logp = diag_logp * valid
        row_total_logp = row_total_logp * valid

    # Per-tile partials in a lane-dense block: lane 0 = diag, lane 1 = total.
    lane = jax.lax.broadcasted_iota(jnp.int32, out_ref.shape, out_ref.ndim - 1)
    out_ref[...] = jnp.where(lane == 0, jnp.sum(diag_logp),
                             jnp.where(lane == 1, jnp.sum(row_total_logp), 0.0))


# --------------------------------------------------------------------------
# Column-tiled fallback (flash-style online LSE) for N too large to keep the
# normalized x1 resident in VMEM.
# --------------------------------------------------------------------------
def _pair_loss_col_kernel(x0_ref, bn_ref, bsum_ref, out_ref,
                          m_sc, l_sc, diag_sc, scale_sc, rowdot_sc, *,
                          n, n_cols, n_rows_pad, mxu_dtype):
    i = pl.program_id(0)
    j = pl.program_id(1)
    tm = x0_ref.shape[0]
    tn = bn_ref.shape[0]

    @pl.when(j == 0)
    def _init():
        x0f = x0_ref[...].astype(jnp.float32)
        a_sq = jnp.sum(x0f * x0f, axis=1, keepdims=True)
        scale_sc[...] = jax.lax.rsqrt(jnp.maximum(a_sq, EPS * EPS)) * INV_TEMPERATURE
        rowdot_sc[...] = jnp.sum(x0f * bsum_ref[...].astype(jnp.float32),
                                 axis=1, keepdims=True)
        m_sc[...] = jnp.full((tm, 1), _NEG_LARGE, jnp.float32)
        l_sc[...] = jnp.zeros((tm, 1), jnp.float32)
        diag_sc[...] = jnp.zeros((tm, 1), jnp.float32)

    row_scale = scale_sc[...]
    sim = jax.lax.dot_general(
        x0_ref[...].astype(mxu_dtype), bn_ref[...],
        dimension_numbers=(((1,), (1,)), ((), ())),
        preferred_element_type=jnp.float32) * row_scale                # [tm, tn]

    # Online log-sum-exp update.
    m_prev = m_sc[...]
    m_new = jnp.maximum(m_prev, jnp.max(sim, axis=1, keepdims=True))
    l_sc[...] = (jnp.exp(m_prev - m_new) * l_sc[...]
                 + jnp.sum(jnp.exp(sim - m_new), axis=1, keepdims=True))
    m_sc[...] = m_new

    # Diagonal contribution of this column block (global index equality).
    row_g = i * tm + jax.lax.broadcasted_iota(jnp.int32, sim.shape, 0)
    col_g = j * tn + jax.lax.broadcasted_iota(jnp.int32, sim.shape, 1)
    diag_sc[...] += jnp.sum(jnp.where(row_g == col_g, sim, 0.0),
                            axis=1, keepdims=True)

    @pl.when(j == pl.num_programs(1) - 1)
    def _finalize():
        m = m_sc[...]
        diag_sim = diag_sc[...]
        sum_exp = l_sc[...]
        if n_cols > n:  # static: padded sim columns are exactly zero
            sum_exp = sum_exp - jnp.float32(n_cols - n) * jnp.exp(-m)
            sum_exp = jnp.maximum(sum_exp, jnp.exp(diag_sim - m))
        norm = m + jnp.log(sum_exp)
        diag_logp = diag_sim - norm
        row_total_logp = rowdot_sc[...] * scale_sc[...] - jnp.float32(n) * norm
        if n_rows_pad > n:  # static
            row_ids = i * tm + jax.lax.broadcasted_iota(jnp.int32, (tm, 1), 0)
            valid = (row_ids < n).astype(jnp.float32)
            diag_logp = diag_logp * valid
            row_total_logp = row_total_logp * valid
        lane = jax.lax.broadcasted_iota(jnp.int32, out_ref.shape, out_ref.ndim - 1)
        out_ref[...] = jnp.where(lane == 0, jnp.sum(diag_logp),
                                 jnp.where(lane == 1, jnp.sum(row_total_logp), 0.0))


# --------------------------------------------------------------------------
# pallas_call wrappers
# --------------------------------------------------------------------------
def _run_row_path(x0p, bnp, bsp, *, n, tm, d_pad, n_cols, n_rows_pad,
                  mxu_dtype, vmem_limit):
    num_tiles = n_rows_pad // tm
    kernel = functools.partial(_pair_loss_row_kernel, n=n, n_cols=n_cols,
                               n_rows_pad=n_rows_pad, mxu_dtype=mxu_dtype)

    def build(single_buffer_resident):
        resident_kwargs = ({"pipeline_mode": pl.Buffered(1)}
                           if single_buffer_resident else {})
        grid_spec = pltpu.PrefetchScalarGridSpec(
            num_scalar_prefetch=0,
            grid=(num_tiles,),
            in_specs=[
                pl.BlockSpec((tm, d_pad), lambda i: (i, 0)),             # x0 tile
                pl.BlockSpec((n_cols, d_pad), lambda i: (0, 0),
                             **resident_kwargs),                         # b_norm resident
                pl.BlockSpec((1, d_pad), lambda i: (0, 0)),              # bsum
            ],
            out_specs=pl.BlockSpec((1, 8, 128), lambda i: (i, 0, 0)),
        )
        return pl.pallas_call(
            kernel,
            out_shape=jax.ShapeDtypeStruct((num_tiles, 8, 128), jnp.float32),
            grid_spec=grid_spec,
            compiler_params=pltpu.CompilerParams(
                dimension_semantics=("parallel",),
                vmem_limit_bytes=vmem_limit),
        )

    try:
        return build(True)(x0p, bnp, bsp)
    except Exception:
        # Fallback if this Pallas build rejects Buffered(1) single-buffering.
        return build(False)(x0p, bnp, bsp)


def _run_col_path(x0p, bnp, bsp, *, n, tm, tn, d_pad, n_cols_pad, n_rows_pad,
                  mxu_dtype, vmem_limit):
    num_row_tiles = n_rows_pad // tm
    num_col_tiles = n_cols_pad // tn
    kernel = functools.partial(_pair_loss_col_kernel, n=n, n_cols=n_cols_pad,
                               n_rows_pad=n_rows_pad, mxu_dtype=mxu_dtype)
    grid_spec = pltpu.PrefetchScalarGridSpec(
        num_scalar_prefetch=0,
        grid=(num_row_tiles, num_col_tiles),
        in_specs=[
            pl.BlockSpec((tm, d_pad), lambda i, j: (i, 0)),              # x0 tile
            pl.BlockSpec((tn, d_pad), lambda i, j: (j, 0)),              # b_norm col tile
            pl.BlockSpec((1, d_pad), lambda i, j: (0, 0)),               # bsum
        ],
        out_specs=pl.BlockSpec((1, 8, 128), lambda i, j: (i, 0, 0)),
        scratch_shapes=[
            pltpu.VMEM((tm, 1), jnp.float32),   # running max m
            pltpu.VMEM((tm, 1), jnp.float32),   # running sum-exp l
            pltpu.VMEM((tm, 1), jnp.float32),   # diag(sim) accumulator
            pltpu.VMEM((tm, 1), jnp.float32),   # row scale  1/(|a| T)
            pltpu.VMEM((tm, 1), jnp.float32),   # x0 . bsum
        ],
    )
    return pl.pallas_call(
        kernel,
        out_shape=jax.ShapeDtypeStruct((num_row_tiles, 8, 128), jnp.float32),
        grid_spec=grid_spec,
        compiler_params=pltpu.CompilerParams(
            dimension_semantics=("parallel", "arbitrary"),
            vmem_limit_bytes=vmem_limit),
    )(x0p, bnp, bsp)


def pair_loss(x0, x1, *, row_tile=None, col_tile=None, use_bf16_mxu=False,
              force_column_tiled=False, vmem_budget_frac=0.8):
    assert x0.shape == x1.shape and x0.ndim == 2, "expected paired [N, D] inputs"
    n, d = x0.shape

    # MXU operand dtype (bf16 path = accuracy/throughput trade-off on v6e/v7x).
    if use_bf16_mxu or x0.dtype == jnp.bfloat16:
        mxu_dtype = jnp.bfloat16
    else:
        mxu_dtype = jnp.float32

    x_itemsize = jnp.dtype(x0.dtype).itemsize
    bn_itemsize = jnp.dtype(mxu_dtype).itemsize
    sub = 8 * max(1, 4 // x_itemsize)          # sublane granule: 8 f32 / 16 bf16

    # Normalize x1 ONCE outside the kernel; bsum feeds the closed-form row-sum.
    x1f = x1.astype(jnp.float32)
    b_n = jnp.sqrt(jnp.sum(x1f * x1f, axis=1, keepdims=True))
    b_norm = x1f / jnp.maximum(b_n, EPS)
    bsum = jnp.sum(b_norm, axis=0, keepdims=True)                     # [1, d]

    d_pad = _round_up(max(d, 128), 128)

    cap = _vmem_capacity_bytes()
    budget = int(vmem_budget_frac * cap)     # never above physical per-core VMEM
    vmem_limit = budget

    if row_tile is None:
        # Generation-aware default: bigger row tiles on 128 MiB parts (v5e/v6e).
        row_tile = 512 if cap >= (96 << 20) else 256
    row_tile = max(sub, _round_up(row_tile, sub))
    tm = _round_up(n, sub) if n <= row_tile else row_tile

    def _single_path(tm_):
        rows = _round_up(n, tm_)
        cols = max(_round_up(n, 128), rows)
        est = (2 * tm_ * d_pad * x_itemsize          # pipelined x0 tile (2 bufs)
               + cols * d_pad * bn_itemsize          # resident b_norm (1 buf)
               + 2 * d_pad * 4                       # bsum
               + 2 * tm_ * d_pad * 4                 # x0f / b_slice f32 temps
               + 4 * tm_ * cols * 4                  # sim + exp temporaries
               + 2 * 8 * 128 * 4 + (1 << 20))
        return rows, cols, est

    n_rows_pad, n_cols_pad, est = _single_path(tm)
    while est > budget and tm > 128:
        tm = max(128, _round_up(tm // 2, sub))
        n_rows_pad, n_cols_pad, est = _single_path(tm)

    use_column_path = force_column_tiled or est > budget
    tn = None

    if use_column_path:
        if col_tile is None:
            col_tile = 512
        tn = max(128, _round_up(col_tile, 128))
        tn = min(tn, _round_up(n, 128))

        def _col_est(tm_, tn_):
            return (2 * tm_ * d_pad * x_itemsize
                    + 2 * tn_ * d_pad * bn_itemsize
                    + 2 * d_pad * 4
                    + tm_ * d_pad * 4
                    + 4 * tm_ * tn_ * 4
                    + 8 * tm_ * 4
                    + 2 * 8 * 128 * 4 + (1 << 20))

        while _col_est(tm, tn) > budget and tn > 128:
            tn = max(128, tn // 2)
        while _col_est(tm, tn) > budget and tm > 128:
            tm = max(128, _round_up(tm // 2, sub))
        n_rows_pad = _round_up(n, tm)
        n_cols_pad = _round_up(n, tn)

    x0p = jnp.pad(x0, ((0, n_rows_pad - n), (0, d_pad - d)))
    bnp = jnp.pad(b_norm, ((0, n_cols_pad - n), (0, d_pad - d))).astype(mxu_dtype)
    bsp = jnp.pad(bsum, ((0, 0), (0, d_pad - d)))

    if use_column_path:
        partials = _run_col_path(x0p, bnp, bsp, n=n, tm=tm, tn=tn, d_pad=d_pad,
                                 n_cols_pad=n_cols_pad, n_rows_pad=n_rows_pad,
                                 mxu_dtype=mxu_dtype, vmem_limit=vmem_limit)
    else:
        partials = _run_row_path(x0p, bnp, bsp, n=n, tm=tm, d_pad=d_pad,
                                 n_cols=n_cols_pad, n_rows_pad=n_rows_pad,
                                 mxu_dtype=mxu_dtype, vmem_limit=vmem_limit)

    # Tiny final reduction + label-smoothed CE in XLA (keeps the grid parallel).
    diag_sum = jnp.sum(partials[:, 0, 0])
    total_sum = jnp.sum(partials[:, 0, 1])
    loss = -((1.0 - LABEL_SMOOTHING) * diag_sum
             + (LABEL_SMOOTHING / n) * total_sum) / n
    return loss


def pair_loss_ref(x0, x1):
    """Pure-JAX reference (mirrors the PyTorch module) for validation."""
    x0 = x0.astype(jnp.float32)
    x1 = x1.astype(jnp.float32)
    a_n = jnp.linalg.norm(x0, axis=1, keepdims=True)
    b_n = jnp.linalg.norm(x1, axis=1, keepdims=True)
    a_norm = x0 / jnp.maximum(a_n, EPS)
    b_norm = x1 / jnp.maximum(b_n, EPS)
    sim = (a_norm @ b_norm.T) / TEMPERATURE
    n = sim.shape[0]
    logp = jax.nn.log_softmax(sim, axis=1)
    q = (1.0 - LABEL_SMOOTHING) * jnp.eye(n) + LABEL_SMOOTHING / n
    return jnp.mean(-jnp.sum(q * logp, axis=1))


if __name__ == "__main__":
    key = jax.random.PRNGKey(0)

    # 1) Small paired batch (matches the module's [N, D] inputs); single tile.
    n, d = 8, 32
    k0, k1 = jax.random.split(key)
    x0 = jax.random.normal(k0, (n, d), dtype=jnp.float32)
    x1 = jax.random.normal(k1, (n, d), dtype=jnp.float32)
    loss = jax.block_until_ready(pair_loss(x0, x1))
    ref = jax.block_until_ready(pair_loss_ref(x0, x1))
    assert jnp.isfinite(loss), "kernel produced non-finite loss"
    assert jnp.allclose(loss, ref, rtol=1e-4, atol=1e-4), (loss, ref)

    # 2) Multi-row-tile path with row + column padding (N not a tile multiple).
    n2, d2 = 20, 48
    k2, k3 = jax.random.split(k1)
    y0 = jax.random.normal(k2, (n2, d2), dtype=jnp.float32)
    y1 = jax.random.normal(k3, (n2, d2), dtype=jnp.float32)
    loss2 = jax.block_until_ready(pair_loss(y0, y1, row_tile=8))
    ref2 = jax.block_until_ready(pair_loss_ref(y0, y1))
    assert jnp.isfinite(loss2), "kernel produced non-finite loss (row-tiled path)"
    assert jnp.allclose(loss2, ref2, rtol=1e-4, atol=1e-4), (loss2, ref2)

    # 3) Column-tiled (flash-style) large-N fallback, forced at a small shape.
    n3, d3 = 200, 64
    k4, k5 = jax.random.split(k3)
    z0 = jax.random.normal(k4, (n3, d3), dtype=jnp.float32)
    z1 = jax.random.normal(k5, (n3, d3), dtype=jnp.float32)
    loss3 = jax.block_until_ready(
        pair_loss(z0, z1, row_tile=64, col_tile=128, force_column_tiled=True))
    ref3 = jax.block_until_ready(pair_loss_ref(z0, z1))
    assert jnp.isfinite(loss3), "kernel produced non-finite loss (column-tiled path)"
    assert jnp.allclose(loss3, ref3, rtol=1e-4, atol=1e-4), (loss3, ref3)

    print("KERNEL_OK")
</pallas_src>

<mosaic_0001>
module attributes {stable_mosaic.version = 11 : i64} {
  func.func @_pair_loss_row_kernel(%arg0: i32, %arg1: memref<8x128xf32, #tpu.memory_space<vmem>>, %arg2: memref<128x128xf32, #tpu.memory_space<vmem>>, %arg3: memref<1x128xf32, #tpu.memory_space<vmem>>, %arg4: memref<1x8x128xf32, #tpu.memory_space<vmem>>) attributes {dimension_semantics = [#tpu.dimension_semantics<parallel>], iteration_bounds = array<i64: 1>, scalar_prefetch = 0 : i64, scratch_operands = 0 : i64, tpu.core_type = #tpu.core_type<tc>, window_params = [{transform_indices = @transform_0, window_bounds = array<i64: 8, 128>}, {pipeline_mode = #tpu.pipeline_mode<synchronous>, transform_indices = @transform_1, window_bounds = array<i64: 128, 128>}, {pipeline_mode = #tpu.pipeline_mode<synchronous>, transform_indices = @transform_2, window_bounds = array<i64: 1, 128>}, {transform_indices = @transform_3, window_bounds = array<i64: 1, 8, 128>}]} {
    %c0 = arith.constant 0 : index
    %c0_0 = arith.constant 0 : index
    %0 = vector.load %arg1[%c0, %c0_0] : memref<8x128xf32, #tpu.memory_space<vmem>>, vector<8x128xf32>
    %1 = arith.mulf %0, %0 : vector<8x128xf32>
    %cst = arith.constant dense<0.000000e+00> : vector<8xf32>
    %2 = vector.multi_reduction <add>, %1, %cst [1] : vector<8x128xf32> to vector<8xf32>
    %3 = vector.shape_cast %2 : vector<8xf32> to vector<8x1xf32>
    %cst_1 = arith.constant 1.000000e-16 : f32
    %4 = vector.broadcast %cst_1 : f32 to vector<8x1xf32>
    %5 = arith.maximumf %3, %4 : vector<8x1xf32>
    %6 = math.rsqrt %5 : vector<8x1xf32>
    %cst_2 = arith.constant 2.000000e+01 : f32
    %7 = vector.broadcast %cst_2 : f32 to vector<8x1xf32>
    %8 = arith.mulf %6, %7 : vector<8x1xf32>
    %c0_3 = arith.constant 0 : index
    %c0_4 = arith.constant 0 : index
    %9 = vector.load %arg2[%c0_3, %c0_4] : memref<128x128xf32, #tpu.memory_space<vmem>>, vector<128x128xf32>
    %cst_5 = arith.constant dense<0.000000e+00> : vector<8x128xf32>
    %10 = tpu.matmul %0, %9, %cst_5 {dimension_numbers = #tpu.dot_dimension_numbers<[1], [1], [0], [0], [0, 0, 1, 0], [], []>} : vector<8x128xf32>, vector<128x128xf32>, vector<8x128xf32> -> vector<8x128xf32>
    %11 = vector.broadcast %8 : vector<8x1xf32> to vector<8x128xf32>
    %12 = arith.mulf %10, %11 : vector<8x128xf32>
    %c8_i32 = arith.constant 8 : i32
    %13 = arith.muli %arg0, %c8_i32 : i32
    %14 = tpu.assume_multiple %13, 8 : i32
    %15 = arith.index_cast %14 : i32 to index
    %c0_6 = arith.constant 0 : index
    %16 = vector.load %arg2[%15, %c0_6] : memref<128x128xf32, #tpu.memory_space<vmem>>, vector<8x128xf32>
    %17 = arith.mulf %0, %16 : vector<8x128xf32>
    %cst_7 = arith.constant dense<0.000000e+00> : vector<8xf32>
    %18 = vector.multi_reduction <add>, %17, %cst_7 [1] : vector<8x128xf32> to vector<8xf32>
    %19 = vector.shape_cast %18 : vector<8xf32> to vector<8x1xf32>
    %20 = arith.mulf %19, %8 : vector<8x1xf32>
    %c0_8 = arith.constant 0 : index
    %c0_9 = arith.constant 0 : index
    %21 = vector.load %arg3[%c0_8, %c0_9] : memref<1x128xf32, #tpu.memory_space<vmem>>, vector<1x128xf32>
    %22 = vector.broadcast %21 : vector<1x128xf32> to vector<8x128xf32>
    %23 = arith.mulf %0, %22 : vector<8x128xf32>
    %cst_10 = arith.constant dense<0.000000e+00> : vector<8xf32>
    %24 = vector.multi_reduction <add>, %23, %cst_10 [1] : vector<8x128xf32> to vector<8xf32>
    %25 = vector.shape_cast %24 : vector<8xf32> to vector<8x1xf32>
    %26 = arith.mulf %25, %8 : vector<8x1xf32>
    %cst_11 = arith.constant dense<0xFF800000> : vector<8xf32>
    %27 = vector.multi_reduction <maximumf>, %12, %cst_11 [1] : vector<8x128xf32> to vector<8xf32>
    %28 = vector.shape_cast %27 : vector<8xf32> to vector<8x1xf32>
    %29 = vector.broadcast %28 : vector<8x1xf32> to vector<8x128xf32>
    %30 = arith.subf %12, %29 : vector<8x128xf32>
    %31 = math.exp %30 : vector<8x128xf32>
    %cst_12 = arith.constant dense<0.000000e+00> : vector<8xf32>
    %32 = vector.multi_reduction <add>, %31, %cst_12 [1] : vector<8x128xf32> to vector<8xf32>
    %33 = vector.shape_cast %32 : vector<8xf32> to vector<8x1xf32>
    %cst_13 = arith.constant 0.000000e+00 : f32
    %34 = vector.broadcast %cst_13 : f32 to vector<8x1xf32>
    %35 = arith.subf %34, %28 : vector<8x1xf32>
    %36 = math.exp %35 : vector<8x1xf32>
    %cst_14 = arith.constant 1.200000e+02 : f32
    %37 = vector.broadcast %cst_14 : f32 to vector<8x1xf32>
    %38 = arith.mulf %37, %36 : vector<8x1xf32>
    %39 = arith.subf %33, %38 : vector<8x1xf32>
    %40 = arith.subf %20, %28 : vector<8x1xf32>
    %41 = math.exp %40 : vector<8x1xf32>
    %42 = arith.maximumf %39, %41 : vector<8x1xf32>
    %43 = math.log %42 : vector<8x1xf32>
    %44 = arith.addf %28, %43 : vector<8x1xf32>
    %45 = arith.subf %20, %44 : vector<8x1xf32>
    %cst_15 = arith.constant 8.000000e+00 : f32
    %46 = vector.broadcast %cst_15 : f32 to vector<8x1xf32>
    %47 = arith.mulf %46, %44 : vector<8x1xf32>
    %48 = arith.subf %26, %47 : vector<8x1xf32>
    %49 = tpu.iota {dimensions = array<i32: 2>} : vector<1x8x128xi32>
    %c0_i32 = arith.constant 0 : i32
    %50 = vector.broadcast %c0_i32 : i32 to vector<1x8x128xi32>
    %51 = arith.cmpi eq, %49, %50 : vector<1x8x128xi32>
    %52 = vector.shape_cast %45 : vector<8x1xf32> to vector<1x8x1xf32>
    %cst_16 = arith.constant dense<0.000000e+00> : vector<1xf32>
    %53 = vector.multi_reduction <add>, %52, %cst_16 [1, 2] : vector<1x8x1xf32> to vector<1xf32>
    %54 = vector.shape_cast %53 : vector<1xf32> to vector<1x1x1xf32>
    %55 = vector.extract %54[0, 0, 0] : f32 from vector<1x1x1xf32>
    %c1_i32 = arith.constant 1 : i32
    %56 = vector.broadcast %c1_i32 : i32 to vector<1x8x128xi32>
    %57 = arith.cmpi eq, %49, %56 : vector<1x8x128xi32>
    %58 = vector.shape_cast %48 : vector<8x1xf32> to vector<1x8x1xf32>
    %cst_17 = arith.constant dense<0.000000e+00> : vector<1xf32>
    %59 = vector.multi_reduction <add>, %58, %cst_17 [1, 2] : vector<1x8x1xf32> to vector<1xf32>
    %60 = vector.shape_cast %59 : vector<1xf32> to vector<1x1x1xf32>
    %61 = vector.extract %60[0, 0, 0] : f32 from vector<1x1x1xf32>
    %cst_18 = arith.constant 0.000000e+00 : f32
    %62 = vector.broadcast %61 : f32 to vector<1x8x128xf32>
    %63 = vector.broadcast %cst_18 : f32 to vector<1x8x128xf32>
    %64 = arith.select %57, %62, %63 : vector<1x8x128xi1>, vector<1x8x128xf32>
    %65 = vector.broadcast %55 : f32 to vector<1x8x128xf32>
    %66 = arith.select %51, %65, %64 : vector<1x8x128xi1>, vector<1x8x128xf32>
    %c0_19 = arith.constant 0 : index
    %c0_20 = arith.constant 0 : index
    %c0_21 = arith.constant 0 : index
    %67 = vector.load %arg4[%c0_19, %c0_20, %c0_21] : memref<1x8x128xf32, #tpu.memory_space<vmem>>, vector<1x8x128xf32>
    tpu.vector_store %arg4[%c0_19, %c0_20, %c0_21], %66 {strides = array<i32>} : memref<1x8x128xf32, #tpu.memory_space<vmem>>, vector<1x8x128xf32>,
    return
  }
  func.func @transform_0(%arg0: i32) -> (i32, i32) {
    %c0_i32 = arith.constant 0 : i32
    %c0_i32_0 = arith.constant 0 : i32
    return %arg0, %c0_i32 : i32, i32
  }
  func.func @transform_1(%arg0: i32) -> (i32, i32) {
    %c0_i32 = arith.constant 0 : i32
    %c0_i32_0 = arith.constant 0 : i32
    %c0_i32_1 = arith.constant 0 : i32
    return %c0_i32, %c0_i32_0 : i32, i32
  }
  func.func @transform_2(%arg0: i32) -> (i32, i32) {
    %c0_i32 = arith.constant 0 : i32
    %c0_i32_0 = arith.constant 0 : i32
    %c0_i32_1 = arith.constant 0 : i32
    return %c0_i32, %c0_i32_0 : i32, i32
  }
  func.func @transform_3(%arg0: i32) -> (i32, i32, i32) {
    %c0_i32 = arith.constant 0 : i32
    %c0_i32_0 = arith.constant 0 : i32
    %c0_i32_1 = arith.constant 0 : i32
    return %arg0, %c0_i32, %c0_i32_0 : i32, i32, i32
  }
}

module attributes {stable_mosaic.version = 11 : i64} {
  func.func @_pair_loss_row_kernel(%arg0: i32, %arg1: memref<8x128xf32, #tpu.memory_space<vmem>>, %arg2: memref<128x128xf32, #tpu.memory_space<vmem>>, %arg3: memref<1x128xf32, #tpu.memory_space<vmem>>, %arg4: memref<1x8x128xf32, #tpu.memory_space<vmem>>) attributes {dimension_semantics = [#tpu.dimension_semantics<parallel>], iteration_bounds = array<i64: 1>, scalar_prefetch = 0 : i64, scratch_operands = 0 : i64, tpu.core_type = #tpu.core_type<tc>, window_params = [{transform_indices = @transform_0, window_bounds = array<i64: 8, 128>}, {pipeline_mode = #tpu.pipeline_mode<synchronous>, transform_indices = @transform_1, window_bounds = array<i64: 128, 128>}, {pipeline_mode = #tpu.pipeline_mode<synchronous>, transform_indices = @transform_2, window_bounds = array<i64: 1, 128>}, {transform_indices = @transform_3, window_bounds = array<i64: 1, 8, 128>}]} {
    %c0 = arith.constant 0 : index
    %c0_0 = arith.constant 0 : index
    %0 = vector.load %arg1[%c0, %c0_0] : memref<8x128xf32, #tpu.memory_space<vmem>>, vector<8x128xf32>
    %1 = arith.mulf %0, %0 : vector<8x128xf32>
    %cst = arith.constant dense<0.000000e+00> : vector<8xf32>
    %2 = vector.multi_reduction <add>, %1, %cst [1] : vector<8x128xf32> to vector<8xf32>
    %3 = vector.shape_cast %2 : vector<8xf32> to vector<8x1xf32>
    %cst_1 = arith.constant 1.000000e-16 : f32
    %4 = vector.broadcast %cst_1 : f32 to vector<8x1xf32>
    %5 = arith.maximumf %3, %4 : vector<8x1xf32>
    %6 = math.rsqrt %5 : vector<8x1xf32>
    %cst_2 = arith.constant 2.000000e+01 : f32
    %7 = vector.broadcast %cst_2 : f32 to vector<8x1xf32>
    %8 = arith.mulf %6, %7 : vector<8x1xf32>
    %c0_3 = arith.constant 0 : index
    %c0_4 = arith.constant 0 : index
    %9 = vector.load %arg2[%c0_3, %c0_4] : memref<128x128xf32, #tpu.memory_space<vmem>>, vector<128x128xf32>
    %cst_5 = arith.constant dense<0.000000e+00> : vector<8x128xf32>
    %10 = tpu.matmul %0, %9, %cst_5 {dimension_numbers = #tpu.dot_dimension_numbers<[1], [1], [0], [0], [0, 0, 1, 0], [], []>} : vector<8x128xf32>, vector<128x128xf32>, vector<8x128xf32> -> vector<8x128xf32>
    %11 = vector.broadcast %8 : vector<8x1xf32> to vector<8x128xf32>
    %12 = arith.mulf %10, %11 : vector<8x128xf32>
    %c8_i32 = arith.constant 8 : i32
    %13 = arith.muli %arg0, %c8_i32 : i32
    %14 = tpu.assume_multiple %13, 8 : i32
    %15 = arith.index_cast %14 : i32 to index
    %c0_6 = arith.constant 0 : index
    %16 = vector.load %arg2[%15, %c0_6] : memref<128x128xf32, #tpu.memory_space<vmem>>, vector<8x128xf32>
    %17 = arith.mulf %0, %16 : vector<8x128xf32>
    %cst_7 = arith.constant dense<0.000000e+00> : vector<8xf32>
    %18 = vector.multi_reduction <add>, %17, %cst_7 [1] : vector<8x128xf32> to vector<8xf32>
    %19 = vector.shape_cast %18 : vector<8xf32> to vector<8x1xf32>
    %20 = arith.mulf %19, %8 : vector<8x1xf32>
    %c0_8 = arith.constant 0 : index
    %c0_9 = arith.constant 0 : index
    %21 = vector.load %arg3[%c0_8, %c0_9] : memref<1x128xf32, #tpu.memory_space<vmem>>, vector<1x128xf32>
    %22 = vector.broadcast %21 : vector<1x128xf32> to vector<8x128xf32>
    %23 = arith.mulf %0, %22 : vector<8x128xf32>
    %cst_10 = arith.constant dense<0.000000e+00> : vector<8xf32>
    %24 = vector.multi_reduction <add>, %23, %cst_10 [1] : vector<8x128xf32> to vector<8xf32>
    %25 = vector.shape_cast %24 : vector<8xf32> to vector<8x1xf32>
    %26 = arith.mulf %25, %8 : vector<8x1xf32>
    %cst_11 = arith.constant dense<0xFF800000> : vector<8xf32>
    %27 = vector.multi_reduction <maximumf>, %12, %cst_11 [1] : vector<8x128xf32> to vector<8xf32>
    %28 = vector.shape_cast %27 : vector<8xf32> to vector<8x1xf32>
    %29 = vector.broadcast %28 : vector<8x1xf32> to vector<8x128xf32>
    %30 = arith.subf %12, %29 : vector<8x128xf32>
    %31 = math.exp %30 : vector<8x128xf32>
    %cst_12 = arith.constant dense<0.000000e+00> : vector<8xf32>
    %32 = vector.multi_reduction <add>, %31, %cst_12 [1] : vector<8x128xf32> to vector<8xf32>
    %33 = vector.shape_cast %32 : vector<8xf32> to vector<8x1xf32>
    %cst_13 = arith.constant 0.000000e+00 : f32
    %34 = vector.broadcast %cst_13 : f32 to vector<8x1xf32>
    %35 = arith.subf %34, %28 : vector<8x1xf32>
    %36 = math.exp %35 : vector<8x1xf32>
    %cst_14 = arith.constant 1.200000e+02 : f32
    %37 = vector.broadcast %cst_14 : f32 to vector<8x1xf32>
    %38 = arith.mulf %37, %36 : vector<8x1xf32>
    %39 = arith.subf %33, %38 : vector<8x1xf32>
    %40 = arith.subf %20, %28 : vector<8x1xf32>
    %41 = math.exp %40 : vector<8x1xf32>
    %42 = arith.maximumf %39, %41 : vector<8x1xf32>
    %43 = math.log %42 : vector<8x1xf32>
    %44 = arith.addf %28, %43 : vector<8x1xf32>
    %45 = arith.subf %20, %44 : vector<8x1xf32>
    %cst_15 = arith.constant 8.000000e+00 : f32
    %46 = vector.broadcast %cst_15 : f32 to vector<8x1xf32>
    %47 = arith.mulf %46, %44 : vector<8x1xf32>
    %48 = arith.subf %26, %47 : vector<8x1xf32>
    %49 = tpu.iota {dimensions = array<i32: 2>} : vector<1x8x128xi32>
    %c0_i32 = arith.constant 0 : i32
    %50 = vector.broadcast %c0_i32 : i32 to vector<1x8x128xi32>
    %51 = arith.cmpi eq, %49, %50 : vector<1x8x128xi32>
    %52 = vector.shape_cast %45 : vector<8x1xf32> to vector<1x8x1xf32>
    %cst_16 = arith.constant dense<0.000000e+00> : vector<1xf32>
    %53 = vector.multi_reduction <add>, %52, %cst_16 [1, 2] : vector<1x8x1xf32> to vector<1xf32>
    %54 = vector.shape_cast %53 : vector<1xf32> to vector<1x1x1xf32>
    %55 = vector.extract %54[0, 0, 0] : f32 from vector<1x1x1xf32>
    %c1_i32 = arith.constant 1 : i32
    %56 = vector.broadcast %c1_i32 : i32 to vector<1x8x128xi32>
    %57 = arith.cmpi eq, %49, %56 : vector<1x8x128xi32>
    %58 = vector.shape_cast %48 : vector<8x1xf32> to vector<1x8x1xf32>
    %cst_17 = arith.constant dense<0.000000e+00> : vector<1xf32>
    %59 = vector.multi_reduction <add>, %58, %cst_17 [1, 2] : vector<1x8x1xf32> to vector<1xf32>
    %60 = vector.shape_cast %59 : vector<1xf32> to vector<1x1x1xf32>
    %61 = vector.extract %60[0, 0, 0] : f32 from vector<1x1x1xf32>
    %cst_18 = arith.constant 0.000000e+00 : f32
    %62 = vector.broadcast %61 : f32 to vector<1x8x128xf32>
    %63 = vector.broadcast %cst_18 : f32 to vector<1x8x128xf32>
    %64 = arith.select %57, %62, %63 : vector<1x8x128xi1>, vector<1x8x128xf32>
    %65 = vector.broadcast %55 : f32 to vector<1x8x128xf32>
    %66 = arith.select %51, %65, %64 : vector<1x8x128xi1>, vector<1x8x128xf32>
    %c0_19 = arith.constant 0 : index
    %c0_20 = arith.constant 0 : index
    %c0_21 = arith.constant 0 : index
    %67 = vector.load %arg4[%c0_19, %c0_20, %c0_21] : memref<1x8x128xf32, #tpu.memory_space<vmem>>, vector<1x8x128xf32>
    tpu.vector_store %arg4[%c0_19, %c0_20, %c0_21], %66 {strides = array<i32>} : memref<1x8x128xf32, #tpu.memory_space<vmem>>, vector<1x8x128xf32>,
    return
  }
  func.func @transform_0(%arg0: i32) -> (i32, i32) {
    %c0_i32 = arith.constant 0 : i32
    %c0_i32_0 = arith.constant 0 : i32
    return %arg0, %c0_i32 : i32, i32
  }
  func.func @transform_1(%arg0: i32) -> (i32, i32) {
    %c0_i32 = arith.constant 0 : i32
    %c0_i32_0 = arith.constant 0 : i32
    %c0_i32_1 = arith.constant 0 : i32
    return %c0_i32, %c0_i32_0 : i32, i32
  }
  func.func @transform_2(%arg0: i32) -> (i32, i32) {
    %c0_i32 = arith.constant 0 : i32
    %c0_i32_0 = arith.constant 0 : i32
    %c0_i32_1 = arith.constant 0 : i32
    return %c0_i32, %c0_i32_0 : i32, i32
  }
  func.func @transform_3(%arg0: i32) -> (i32, i32, i32) {
    %c0_i32 = arith.constant 0 : i32
    %c0_i32_0 = arith.constant 0 : i32
    %c0_i32_1 = arith.constant 0 : i32
    return %arg0, %c0_i32, %c0_i32_0 : i32, i32, i32
  }
}

</mosaic_0001>

<llo_original>
// kernel: tpu_custom_call.1
$region0: #{tpu_custom_call.1}
  #allocation0 [shape = 'u32[]', space=smem, size = 0x4, offset = 0x4, fixed_abs, tag = 'smem constant byte address 0x4 - core index']
  #allocation1 [shape = 'u32[72,128]{1,0:T(1,128)}', space=vmem, size = 0x9000, scoped, tag = 'internal scratch']
  %s0 = inlined_call_operand.hbm [shape: f32[8,128], index: 0, kind: input, shape index: {}]
  %s1 = inlined_call_operand.hbm [shape: f32[128,128], index: 1, kind: input, shape index: {}]
  %s2 = inlined_call_operand.vmem [shape: f32[1,128], index: 2, kind: input, shape index: {}]
  %s3 = inlined_call_operand.hbm [shape: f32[1,8,128], index: 3, kind: output, shape index: {}]
  %s4 = sld [smem:[#allocation0]]
  $region30: #{tpu_custom_call.1} parent=0
    _
  %s6 = ssub.s32 1, %s4
  %s7 = scalar_select 0, %s6, %s4
  $region1: #{tpu_custom_call.1} parent=0
    #allocation2 [shape = 'u8[4096]{0}', space=vmem, size = 0x1000, scoped, tag = 'input window, operand 0, single buffered']
    #allocation3 [shape = 's32[1]{0}', space=sflag, size = 0x4, scoped, tag = 'scoped memory for tpu_custom_call.1']
    #allocation4 [shape = 's32[1]{0}', space=sflag, size = 0x4, scoped, tag = 'scoped memory for tpu_custom_call.1']
    #allocation5 [shape = 'u8[65536]{0}', space=vmem, size = 0x10000, scoped, tag = 'input window, operand 1, single buffered']
    #allocation6 [shape = 's32[1]{0}', space=sflag, size = 0x4, scoped, tag = 'scoped memory for tpu_custom_call.1']
    #allocation7 [shape = 'u8[4096]{0}', space=vmem, size = 0x1000, scoped, tag = 'output window, operand 0, single buffered']
    %8 = vsyncpa [#allocation3], 0
    %9 = vsyncpa [#allocation6], 0
    %10 = vsyncpa [#allocation4], 0
    // Predicated region
    $region2: #{tpu_custom_call.1} parent=1 // pred_check
      _
    $region3: #{tpu_custom_call.1} parent=1 // pred_check_branch
      %12 = sbr.rel (0) target = $region5
    $region4: #{tpu_custom_call.1} parent=1 // pred_region
      %14 = vsyncadd [#allocation3], 0
      %s16 = sshll.u32 %s0, 4
      %s17 = int_to_ptr.hbm [resolvable:$true] %s16
      %s18 = sshll.u32 [#allocation2], 4
      %s19 = int_to_ptr.vmem [resolvable:$true] %s18
      %21 = dma.hbm_to_vmem [thread:$0]  %s17, 128, %s19, [#allocation3]
    $region5: #{tpu_custom_call.1} parent=1 // pred_fallthru
      _
    // Predicated region
    $region6: #{tpu_custom_call.1} parent=1 // pred_check
      _
    $region7: #{tpu_custom_call.1} parent=1 // pred_check_branch
      %23 = sbr.rel (0) target = $region9
    $region8: #{tpu_custom_call.1} parent=1 // pred_region
      %25 = vsyncadd [#allocation6], 0
      %s26 = sshll.u32 %s1, 4
      %s27 = int_to_ptr.hbm [resolvable:$true] %s26
      %s28 = sshll.u32 [#allocation5], 4
      %s29 = int_to_ptr.vmem [resolvable:$true] %s28
      %34 = dma.hbm_to_vmem [thread:$0]  %s27, 2048, %s29, [#allocation6], 128, 128, 8
    $region9: #{tpu_custom_call.1} parent=1 // pred_fallthru
      _
    // Predicated region
    $region10: #{tpu_custom_call.1} parent=1 // pred_check
      _
    $region11: #{tpu_custom_call.1} parent=1 // pred_check_branch
      %36 = sbr.rel (0) target = $region13
    $region12: #{tpu_custom_call.1} parent=1 // pred_region
      _
    $region13: #{tpu_custom_call.1} parent=1 // pred_fallthru
      _
    // Predicated region
    $region14: #{tpu_custom_call.1} parent=1 // pred_check
      _
    $region15: #{tpu_custom_call.1} parent=1 // pred_check_branch
      %38 = sbr.rel (0) target = $region17
    $region16: #{tpu_custom_call.1} parent=1 // pred_region
      %40 = dma.done [#allocation3], 128
    $region17: #{tpu_custom_call.1} parent=1 // pred_fallthru
      _
    // Predicated region
    $region18: #{tpu_custom_call.1} parent=1 // pred_check
      _
    $region19: #{tpu_custom_call.1} parent=1 // pred_check_branch
      %42 = sbr.rel (0) target = $region21
    $region20: #{tpu_custom_call.1} parent=1 // pred_region
      %44 = dma.done [#allocation6], 2048
    $region21: #{tpu_custom_call.1} parent=1 // pred_fallthru
      _
    %v45 = vld [vmem:[#allocation2] sm:$0xff]
    %v46 = vmul.f32 %v45, %v45
    %47 = vadd.xlane.f32.xlu0 %v46
    %v48 = vpop.xlane.xlu0 %47
    %v49 = vmax.f32 %v48, 1e-16
    %v50 = vrsqrt.pop %v49
    %v51 = vmul.f32 %v50, %v49
    %v52 = vmul.f32 %v51, %v50
    %v53 = vmul.f32 0.5, %v52
    %v54 = vsub.f32 1.5, %v53
    %v55 = vmul.f32 %v50, %v54
    %vm56 = vweird.f32 %v49
    %vm57 = vweird.f32 %v50
    %vm58 = vmor %vm56, %vm57
    %v59 = vsel %vm58, %v50, %v55
    %v60 = vmul.f32 %v59, 20.0
    %v61 = vld [vmem:[#allocation5] sm:$0xff]
    %v62 = vld [vmem:[#allocation5 + $0x8] sm:$0xff]
    %v63 = vld [vmem:[#allocation5 + $0x10] sm:$0xff]
    %v64 = vld [vmem:[#allocation5 + $0x18] sm:$0xff]
    %v65 = vld [vmem:[#allocation5 + $0x20] sm:$0xff]
    %v66 = vld [vmem:[#allocation5 + $0x28] sm:$0xff]
    %v67 = vld [vmem:[#allocation5 + $0x30] sm:$0xff]
    %v68 = vld [vmem:[#allocation5 + $0x38] sm:$0xff]
    %v69 = vld [vmem:[#allocation5 + $0x40] sm:$0xff]
    %v70 = vld [vmem:[#allocation5 + $0x48] sm:$0xff]
    %v71 = vld [vmem:[#allocation5 + $0x50] sm:$0xff]
    %v72 = vld [vmem:[#allocation5 + $0x58] sm:$0xff]
    %v73 = vld [vmem:[#allocation5 + $0x60] sm:$0xff]
    %v74 = vld [vmem:[#allocation5 + $0x68] sm:$0xff]
    %v75 = vld [vmem:[#allocation5 + $0x70] sm:$0xff]
    %v76 = vld [vmem:[#allocation5 + $0x78] sm:$0xff]
    %77 = vmatpush.xpose.msra.mxu0 %v76
    %78 = vmatpush.xpose.msra.mxu0 %v75
    %79 = vmatpush.xpose.msra.mxu0 %v74
    %80 = vmatpush.xpose.msra.mxu0 %v73
    %81 = vmatpush.xpose.msra.mxu0 %v72
    %82 = vmatpush.xpose.msra.mxu0 %v71
    %83 = vmatpush.xpose.msra.mxu0 %v70
    %84 = vmatpush.xpose.msra.mxu0 %v69
    %85 = vmatpush.xpose.msra.mxu0 %v68
    %86 = vmatpush.xpose.msra.mxu0 %v67
    %87 = vmatpush.xpose.msra.mxu0 %v66
    %88 = vmatpush.xpose.msra.mxu0 %v65
    %89 = vmatpush.xpose.msra.mxu0 %v64
    %90 = vmatpush.xpose.msra.mxu0 %v63
    %91 = vmatpush.xpose.msra.mxu0 %v62
    %92 = vmatpush.xpose.msra.mxu0 %v61
    %93 = vmatmul.f32.gmra.mxu0 %v45
    %v94 = vpop.f32.mrf.mxu0
    %v95 = vadd.f32 0.0, %v94
    %96 = vdwg.mxu0
    %v97 = vmul.f32 %v95, %v60
    %s98 = smul.u32 0, 8
    %s99 = scalar_lea.vmem [#allocation5], %s98
    %v100 = vld [vmem:[%s99] sm:$0xff]
    %v101 = vmul.f32 %v45, %v100
    %102 = vadd.xlane.f32.xlu0 %v101
    %v103 = vpop.xlane.xlu0 %102
    %v104 = vmul.f32 %v103, %v60
    %v105 = vld [vmem:[%s2] sm:$0x1]
    %v107 = vperm.slane %v105, 0
    %v109 = vmul.f32 %v45, %v107
    %110 = vadd.xlane.f32.xlu0 %v109
    %v111 = vpop.xlane.xlu0 %110
    %v112 = vmul.f32 %v111, %v60
    %113 = vmax.xlane.f32.xlu0 %v97
    %v114 = vpop.xlane.xlu0 %113
    %v115 = vsub.f32 %v97, %v114
    %v116 = vmul.f32 %v115, 1.442695
    %v117 = vpow.pop %v116
    %118 = vadd.xlane.f32.xlu0 %v117
    %v119 = vpop.xlane.xlu0 %118
    %v120 = vsub.f32 0.0, %v114
    %v121 = vmul.f32 %v120, 1.442695
    %v122 = vpow.pop %v121
    %v123 = vmul.f32 %v122, 120.0
    %v124 = vsub.f32 %v119, %v123
    %v125 = vsub.f32 %v104, %v114
    %v126 = vmul.f32 %v125, 1.442695
    %v127 = vpow.pop %v126
    %v128 = vmax.f32 %v124, %v127
    %v129 = vlog2.pop %v128
    %v130 = vmul.f32 %v129, 0.6931472
    %v131 = vadd.f32 %v114, %v130
    %v132 = vsub.f32 %v104, %v131
    %v133 = vmul.f32 %v131, 8.0
    %v134 = vsub.f32 %v112, %v133
    %v135 = vlaneseq
    %v136 = vand.u32 %v135, 127
    %vm137 = vcmp.eq.s32.totalorder %v136, 0
    %vm138 = vcmask 7168
    %v139 = vsel %vm138, %v132, 0.0
    %140 = vadd.xlane.f32.xlu0 %v139
    %v141 = vpop.xlane.xlu0 %140
    %v142 = vrot.slane %v141, 4
    %v143 = vadd.f32 %v141, %v142
    %v144 = vrot.slane %v143, 2
    %v145 = vadd.f32 %v143, %v144
    %v146 = vrot.slane %v145, 1
    %v147 = vadd.f32 %v145, %v146
    %s148 = vtos %v147
    %vm149 = vcmp.eq.s32.totalorder %v136, 1
    %v150 = vsel %vm138, %v134, 0.0
    %151 = vadd.xlane.f32.xlu0 %v150
    %v152 = vpop.xlane.xlu0 %151
    %v153 = vrot.slane %v152, 4
    %v154 = vadd.f32 %v152, %v153
    %v155 = vrot.slane %v154, 2
    %v156 = vadd.f32 %v154, %v155
    %v157 = vrot.slane %v156, 1
    %v158 = vadd.f32 %v156, %v157
    %s159 = vtos %v158
    %v160 = vstv %s159
    %v161 = vsel %vm149, %v160, 0.0
    %v162 = vstv %s148
    %v163 = vsel %vm137, %v162, %v161
    %164 = vst [vmem:[#allocation7] sm:$0xff] %v163
    // Predicated region
    $region22: #{tpu_custom_call.1} parent=1 // pred_check
      _
    $region23: #{tpu_custom_call.1} parent=1 // pred_check_branch
      %166 = sbr.rel (0) target = $region25
    $region24: #{tpu_custom_call.1} parent=1 // pred_region
      %168 = vsyncadd [#allocation4], 0
      %s170 = sshll.u32 [#allocation7], 4
      %s171 = int_to_ptr.vmem [resolvable:$true] %s170
      %s172 = sshll.u32 %s3, 4
      %s173 = int_to_ptr.hbm [resolvable:$true] %s172
      %175 = dma.vmem_to_hbm [thread:$0]  %s171, 128, %s173, [#allocation4]
    $region25: #{tpu_custom_call.1} parent=1 // pred_fallthru
      _
    // Predicated region
    $region26: #{tpu_custom_call.1} parent=1 // pred_check
      _
    $region27: #{tpu_custom_call.1} parent=1 // pred_check_branch
      %177 = sbr.rel (0) target = $region29
    $region28: #{tpu_custom_call.1} parent=1 // pred_region
      %179 = dma.done [#allocation4], 128
    $region29: #{tpu_custom_call.1} parent=1 // pred_fallthru
      _
    %180 = vsyncpa [#allocation3], 1
    %181 = vsyncpa [#allocation6], 1
    %182 = vsyncpa [#allocation4], 1

// kernel: tpu_custom_call.1
$region0: #{tpu_custom_call.1}
  #allocation0 [shape = 'u32[]', space=smem, size = 0x4, offset = 0x4, fixed_abs, tag = 'smem constant byte address 0x4 - core index']
  #allocation1 [shape = 'u32[72,128]{1,0:T(1,128)}', space=vmem, size = 0x9000, scoped, tag = 'internal scratch']
  %s0 = inlined_call_operand.hbm [shape: f32[8,128], index: 0, kind: input, shape index: {}]
  %s1 = inlined_call_operand.hbm [shape: f32[128,128], index: 1, kind: input, shape index: {}]
  %s2 = inlined_call_operand.vmem [shape: f32[1,128], index: 2, kind: input, shape index: {}]
  %s3 = inlined_call_operand.hbm [shape: f32[1,8,128], index: 3, kind: output, shape index: {}]
  %s4 = sld [smem:[#allocation0]]
  $region30: #{tpu_custom_call.1} parent=0
    _
  %s6 = ssub.s32 1, %s4
  %s7 = scalar_select 0, %s6, %s4
  $region1: #{tpu_custom_call.1} parent=0
    #allocation2 [shape = 'u8[4096]{0}', space=vmem, size = 0x1000, scoped, tag = 'input window, operand 0, single buffered']
    #allocation3 [shape = 's32[1]{0}', space=sflag, size = 0x4, scoped, tag = 'scoped memory for tpu_custom_call.1']
    #allocation4 [shape = 's32[1]{0}', space=sflag, size = 0x4, scoped, tag = 'scoped memory for tpu_custom_call.1']
    #allocation5 [shape = 'u8[65536]{0}', space=vmem, size = 0x10000, scoped, tag = 'input window, operand 1, single buffered']
    #allocation6 [shape = 's32[1]{0}', space=sflag, size = 0x4, scoped, tag = 'scoped memory for tpu_custom_call.1']
    #allocation7 [shape = 'u8[4096]{0}', space=vmem, size = 0x1000, scoped, tag = 'output window, operand 0, single buffered']
    %8 = vsyncpa [#allocation3], 0
    %9 = vsyncpa [#allocation6], 0
    %10 = vsyncpa [#allocation4], 0
    // Predicated region
    $region2: #{tpu_custom_call.1} parent=1 // pred_check
      _
    $region3: #{tpu_custom_call.1} parent=1 // pred_check_branch
      %12 = sbr.rel (0) target = $region5
    $region4: #{tpu_custom_call.1} parent=1 // pred_region
      %14 = vsyncadd [#allocation3], 0
      %s16 = sshll.u32 %s0, 4
      %s17 = int_to_ptr.hbm [resolvable:$true] %s16
      %s18 = sshll.u32 [#allocation2], 4
      %s19 = int_to_ptr.vmem [resolvable:$true] %s18
      %21 = dma.hbm_to_vmem [thread:$0]  %s17, 128, %s19, [#allocation3]
    $region5: #{tpu_custom_call.1} parent=1 // pred_fallthru
      _
    // Predicated region
    $region6: #{tpu_custom_call.1} parent=1 // pred_check
      _
    $region7: #{tpu_custom_call.1} parent=1 // pred_check_branch
      %23 = sbr.rel (0) target = $region9
    $region8: #{tpu_custom_call.1} parent=1 // pred_region
      %25 = vsyncadd [#allocation6], 0
      %s26 = sshll.u32 %s1, 4
      %s27 = int_to_ptr.hbm [resolvable:$true] %s26
      %s28 = sshll.u32 [#allocation5], 4
      %s29 = int_to_ptr.vmem [resolvable:$true] %s28
      %34 = dma.hbm_to_vmem [thread:$0]  %s27, 2048, %s29, [#allocation6], 128, 128, 8
    $region9: #{tpu_custom_call.1} parent=1 // pred_fallthru
      _
    // Predicated region
    $region10: #{tpu_custom_call.1} parent=1 // pred_check
      _
    $region11: #{tpu_custom_call.1} parent=1 // pred_check_branch
      %36 = sbr.rel (0) target = $region13
    $region12: #{tpu_custom_call.1} parent=1 // pred_region
      _
    $region13: #{tpu_custom_call.1} parent=1 // pred_fallthru
      _
    // Predicated region
    $region14: #{tpu_custom_call.1} parent=1 // pred_check
      _
    $region15: #{tpu_custom_call.1} parent=1 // pred_check_branch
      %38 = sbr.rel (0) target = $region17
    $region16: #{tpu_custom_call.1} parent=1 // pred_region
      %40 = dma.done [#allocation3], 128
    $region17: #{tpu_custom_call.1} parent=1 // pred_fallthru
      _
    // Predicated region
    $region18: #{tpu_custom_call.1} parent=1 // pred_check
      _
    $region19: #{tpu_custom_call.1} parent=1 // pred_check_branch
      %42 = sbr.rel (0) target = $region21
    $region20: #{tpu_custom_call.1} parent=1 // pred_region
      %44 = dma.done [#allocation6], 2048
    $region21: #{tpu_custom_call.1} parent=1 // pred_fallthru
      _
    %v45 = vld [vmem:[#allocation2] sm:$0xff]
    %v46 = vmul.f32 %v45, %v45
    %47 = vadd.xlane.f32.xlu0 %v46
    %v48 = vpop.xlane.xlu0 %47
    %v49 = vmax.f32 %v48, 1e-16
    %v50 = vrsqrt.pop %v49
    %v51 = vmul.f32 %v50, %v49
    %v52 = vmul.f32 %v51, %v50
    %v53 = vmul.f32 0.5, %v52
    %v54 = vsub.f32 1.5, %v53
    %v55 = vmul.f32 %v50, %v54
    %vm56 = vweird.f32 %v49
    %vm57 = vweird.f32 %v50
    %vm58 = vmor %vm56, %vm57
    %v59 = vsel %vm58, %v50, %v55
    %v60 = vmul.f32 %v59, 20.0
    %v61 = vld [vmem:[#allocation5] sm:$0xff]
    %v62 = vld [vmem:[#allocation5 + $0x8] sm:$0xff]
    %v63 = vld [vmem:[#allocation5 + $0x10] sm:$0xff]
    %v64 = vld [vmem:[#allocation5 + $0x18] sm:$0xff]
    %v65 = vld [vmem:[#allocation5 + $0x20] sm:$0xff]
    %v66 = vld [vmem:[#allocation5 + $0x28] sm:$0xff]
    %v67 = vld [vmem:[#allocation5 + $0x30] sm:$0xff]
    %v68 = vld [vmem:[#allocation5 + $0x38] sm:$0xff]
    %v69 = vld [vmem:[#allocation5 + $0x40] sm:$0xff]
    %v70 = vld [vmem:[#allocation5 + $0x48] sm:$0xff]
    %v71 = vld [vmem:[#allocation5 + $0x50] sm:$0xff]
    %v72 = vld [vmem:[#allocation5 + $0x58] sm:$0xff]
    %v73 = vld [vmem:[#allocation5 + $0x60] sm:$0xff]
    %v74 = vld [vmem:[#allocation5 + $0x68] sm:$0xff]
    %v75 = vld [vmem:[#allocation5 + $0x70] sm:$0xff]
    %v76 = vld [vmem:[#allocation5 + $0x78] sm:$0xff]
    %77 = vmatpush.xpose.msra.mxu0 %v76
    %78 = vmatpush.xpose.msra.mxu0 %v75
    %79 = vmatpush.xpose.msra.mxu0 %v74
    %80 = vmatpush.xpose.msra.mxu0 %v73
    %81 = vmatpush.xpose.msra.mxu0 %v72
    %82 = vmatpush.xpose.msra.mxu0 %v71
    %83 = vmatpush.xpose.msra.mxu0 %v70
    %84 = vmatpush.xpose.msra.mxu0 %v69
    %85 = vmatpush.xpose.msra.mxu0 %v68
    %86 = vmatpush.xpose.msra.mxu0 %v67
    %87 = vmatpush.xpose.msra.mxu0 %v66
    %88 = vmatpush.xpose.msra.mxu0 %v65
    %89 = vmatpush.xpose.msra.mxu0 %v64
    %90 = vmatpush.xpose.msra.mxu0 %v63
    %91 = vmatpush.xpose.msra.mxu0 %v62
    %92 = vmatpush.xpose.msra.mxu0 %v61
    %93 = vmatmul.f32.gmra.mxu0 %v45
    %v94 = vpop.f32.mrf.mxu0
    %v95 = vadd.f32 0.0, %v94
    %96 = vdwg.mxu0
    %v97 = vmul.f32 %v95, %v60
    %s98 = smul.u32 0, 8
    %s99 = scalar_lea.vmem [#allocation5], %s98
    %v100 = vld [vmem:[%s99] sm:$0xff]
    %v101 = vmul.f32 %v45, %v100
    %102 = vadd.xlane.f32.xlu0 %v101
    %v103 = vpop.xlane.xlu0 %102
    %v104 = vmul.f32 %v103, %v60
    %v105 = vld [vmem:[%s2] sm:$0x1]
    %v107 = vperm.slane %v105, 0
    %v109 = vmul.f32 %v45, %v107
    %110 = vadd.xlane.f32.xlu0 %v109
    %v111 = vpop.xlane.xlu0 %110
    %v112 = vmul.f32 %v111, %v60
    %113 = vmax.xlane.f32.xlu0 %v97
    %v114 = vpop.xlane.xlu0 %113
    %v115 = vsub.f32 %v97, %v114
    %v116 = vmul.f32 %v115, 1.442695
    %v117 = vpow.pop %v116
    %118 = vadd.xlane.f32.xlu0 %v117
    %v119 = vpop.xlane.xlu0 %118
    %v120 = vsub.f32 0.0, %v114
    %v121 = vmul.f32 %v120, 1.442695
    %v122 = vpow.pop %v121
    %v123 = vmul.f32 %v122, 120.0
    %v124 = vsub.f32 %v119, %v123
    %v125 = vsub.f32 %v104, %v114
    %v126 = vmul.f32 %v125, 1.442695
    %v127 = vpow.pop %v126
    %v128 = vmax.f32 %v124, %v127
    %v129 = vlog2.pop %v128
    %v130 = vmul.f32 %v129, 0.6931472
    %v131 = vadd.f32 %v114, %v130
    %v132 = vsub.f32 %v104, %v131
    %v133 = vmul.f32 %v131, 8.0
    %v134 = vsub.f32 %v112, %v133
    %v135 = vlaneseq
    %v136 = vand.u32 %v135, 127
    %vm137 = vcmp.eq.s32.totalorder %v136, 0
    %vm138 = vcmask 7168
    %v139 = vsel %vm138, %v132, 0.0
    %140 = vadd.xlane.f32.xlu0 %v139
    %v141 = vpop.xlane.xlu0 %140
    %v142 = vrot.slane %v141, 4
    %v143 = vadd.f32 %v141, %v142
    %v144 = vrot.slane %v143, 2
    %v145 = vadd.f32 %v143, %v144
    %v146 = vrot.slane %v145, 1
    %v147 = vadd.f32 %v145, %v146
    %s148 = vtos %v147
    %vm149 = vcmp.eq.s32.totalorder %v136, 1
    %v150 = vsel %vm138, %v134, 0.0
    %151 = vadd.xlane.f32.xlu0 %v150
    %v152 = vpop.xlane.xlu0 %151
    %v153 = vrot.slane %v152, 4
    %v154 = vadd.f32 %v152, %v153
    %v155 = vrot.slane %v154, 2
    %v156 = vadd.f32 %v154, %v155
    %v157 = vrot.slane %v156, 1
    %v158 = vadd.f32 %v156, %v157
    %s159 = vtos %v158
    %v160 = vstv %s159
    %v161 = vsel %vm149, %v160, 0.0
    %v162 = vstv %s148
    %v163 = vsel %vm137, %v162, %v161
    %164 = vst [vmem:[#allocation7] sm:$0xff] %v163
    // Predicated region
    $region22: #{tpu_custom_call.1} parent=1 // pred_check
      _
    $region23: #{tpu_custom_call.1} parent=1 // pred_check_branch
      %166 = sbr.rel (0) target = $region25
    $region24: #{tpu_custom_call.1} parent=1 // pred_region
      %168 = vsyncadd [#allocation4], 0
      %s170 = sshll.u32 [#allocation7], 4
      %s171 = int_to_ptr.vmem [resolvable:$true] %s170
      %s172 = sshll.u32 %s3, 4
      %s173 = int_to_ptr.hbm [resolvable:$true] %s172
      %175 = dma.vmem_to_hbm [thread:$0]  %s171, 128, %s173, [#allocation4]
    $region25: #{tpu_custom_call.1} parent=1 // pred_fallthru
      _
    // Predicated region
    $region26: #{tpu_custom_call.1} parent=1 // pred_check
      _
    $region27: #{tpu_custom_call.1} parent=1 // pred_check_branch
      %177 = sbr.rel (0) target = $region29
    $region28: #{tpu_custom_call.1} parent=1 // pred_region
      %179 = dma.done [#allocation4], 128
    $region29: #{tpu_custom_call.1} parent=1 // pred_fallthru
      _
    %180 = vsyncpa [#allocation3], 1
    %181 = vsyncpa [#allocation6], 1
    %182 = vsyncpa [#allocation4], 1

</llo_original>
